<compile_context>
chip_gen: v6e
topology: v6e:2x2x1
jax: 0.10.0
libtpu: 0.0.40
codegen_flags: <defaults>
</compile_context>

<pallas_src>
import functools

import jax
import jax.numpy as jnp
from jax.experimental import pallas as pl
from jax.experimental.pallas import tpu as pltpu


def _leaky_relu(x, slope=0.01):
    return jnp.where(x >= 0, x, slope * x)


def att0_kernel(i_ref, u_ref, wa_ref, ba_ref, ws_ref, rm_ref, gvm_ref,
                bvm_ref, rd_ref, o_ref, *, approx_recip):
    """One grid step = one lane-dense (TB, M*D) batch tile.

    i_ref  : (TB, L)  items, L = M*D lanes (f32 or bf16 stream)
    u_ref  : (TB, D)  user embedding (f32)
    wa_ref : (L, L)   kron(I_M, Wa)                  [mxu dtype]
    ba_ref : (1, L)   tile(ba, M)
    ws_ref : (L, M)   kron(I_M, wh^T)   (per-item score contraction)
    rm_ref : (M, L)   kron(I_M, 1_D)    (alpha -> per-lane broadcast)
    gvm_ref: (L, D)   kron(1_M, Wv@Wm)               [mxu dtype]
    bvm_ref: (1, D)   bv@Wm + bm
    rd_ref : (D, L)   kron(1_M^T, I_D)  (per-batch -> per-lane broadcast)
    o_ref  : (TB, L)  output slab
    """
    f32 = jnp.float32
    mxu_dt = wa_ref.dtype

    i_raw = i_ref[...]                                    # (TB, L)
    i_f32 = i_raw.astype(f32)
    i_mxu = i_raw if i_raw.dtype == mxu_dt else i_raw.astype(mxu_dt)

    # ---- Att_add_mp hidden: leaky_relu(i @ Wa + ba), block-diag Wa ---------
    hid = jnp.dot(i_mxu, wa_ref[...], preferred_element_type=f32)
    hid = _leaky_relu(hid + ba_ref[...])                  # (TB, L) f32

    # ---- per-item scores + softmax over items (bh dropped: invariant) ------
    score = jnp.dot(hid, ws_ref[...], preferred_element_type=f32)   # (TB, M)
    mmax = jnp.max(score, axis=-1, keepdims=True)
    e = jnp.exp(score - mmax)
    denom = jnp.sum(e, axis=-1, keepdims=True)
    if approx_recip:
        alphas = e * pl.reciprocal(denom, approx=True)    # divide on the EUP
    else:
        alphas = e / denom                                # exact (test path)

    # ---- broadcast alphas to each item's D lanes (MXU is slack) ------------
    alphas_rep = jnp.dot(alphas, rm_ref[...], preferred_element_type=f32)

    # ---- folded value-proj + mp_w: agg = (sum_m a_m i_m)(Wv@Wm) + bv@Wm+bm --
    agg = jnp.dot((alphas_rep * i_f32).astype(mxu_dt), gvm_ref[...],
                  preferred_element_type=f32) + bvm_ref[...]        # (TB, D)

    # ---- fuse with user embedding: u*(i+agg) = u*i + (u*agg), replicated ---
    u = u_ref[...].astype(f32)                                       # (TB, D)
    u_rep = jnp.dot(u, rd_ref[...], preferred_element_type=f32)      # (TB, L)
    ua_rep = jnp.dot(u * agg, rd_ref[...], preferred_element_type=f32)

    o_ref[...] = _leaky_relu(u_rep * i_f32 + ua_rep).astype(o_ref.dtype)


def att0_16_0_forward(embeddings, params, *, block_b=512,
                      mxu_dtype=jnp.bfloat16,   # big replicated weight matmuls
                      stream_dtype=None,        # i_em HBM dtype (None -> f32)
                      out_dtype=None,           # output HBM dtype (None -> f32)
                      approx_recip=True):
    """embeddings: (B, N, D) float32; returns (B, N-1, D) in `out_dtype`."""
    f32 = jnp.float32
    stream_dtype = f32 if stream_dtype is None else stream_dtype
    out_dtype = f32 if out_dtype is None else out_dtype

    B, N, D = embeddings.shape
    M = N - 1
    L = M * D

    # ---- glue (plain JAX): slice user/items, lane-dense flatten -------------
    u_em = embeddings[:, 0, :].astype(f32)                       # (B, D)
    i_flat = embeddings[:, 1:, :].reshape(B, L).astype(stream_dtype)  # (B, L)

    # ---- fold + replicate weights once per call (cheap at D=32) -------------
    wa = params["wa"].astype(f32)
    wh = params["wh"].astype(f32)
    wvm = params["wv"].astype(f32) @ params["wm"].astype(f32)    # (D, D)
    bvm = params["bv"].astype(f32) @ params["wm"].astype(f32) \
        + params["bm"].astype(f32)                               # (1, D)
    eye_m = jnp.eye(M, dtype=f32)
    wa_rep = jnp.kron(eye_m, wa).astype(mxu_dtype)               # (L, L)
    ba_rep = jnp.tile(params["ba"].astype(f32), (1, M))          # (1, L)
    ws = jnp.kron(eye_m, wh.T)                                   # (L, M)
    rm = jnp.kron(eye_m, jnp.ones((1, D), f32))                  # (M, L)
    gvm = jnp.kron(jnp.ones((M, 1), f32), wvm).astype(mxu_dtype) # (L, D)
    rd = jnp.kron(jnp.ones((1, M), f32), jnp.eye(D, dtype=f32))  # (D, L)
    # bh intentionally dropped: uniform shift of all scores is softmax-invariant.

    # ---- batch tiling: aim for >=2 grid steps (v7x has 2 TensorCores) -------
    tb = min(int(block_b), max(8, pl.cdiv(B, 2)))
    if tb >= B:
        tb = B                                   # single full-extent block
        b_pad = B
    else:
        tb = max(8, (tb // 8) * 8)               # (8,128) sublane rule
        b_pad = pl.cdiv(B, tb) * tb
    if b_pad != B:                               # zero-pad: no OOB garbage rows
        i_flat = jnp.pad(i_flat, ((0, b_pad - B), (0, 0)))
        u_em = jnp.pad(u_em, ((0, b_pad - B), (0, 0)))
    grid = (b_pad // tb,)

    const = lambda b: (0, 0)
    kernel = functools.partial(att0_kernel, approx_recip=bool(approx_recip))

    out_flat = pl.pallas_call(
        kernel,
        out_shape=jax.ShapeDtypeStruct((b_pad, L), out_dtype),
        grid_spec=pltpu.PrefetchScalarGridSpec(
            num_scalar_prefetch=0,
            grid=grid,
            in_specs=[
                pl.BlockSpec((tb, L), lambda b: (b, 0)),   # i_em (lane-dense)
                pl.BlockSpec((tb, D), lambda b: (b, 0)),   # u_em (squeezed 2-D)
                pl.BlockSpec((L, L), const),               # kron(I_M, Wa)
                pl.BlockSpec((1, L), const),               # tile(ba)
                pl.BlockSpec((L, M), const),               # kron(I_M, wh^T)
                pl.BlockSpec((M, L), const),               # kron(I_M, 1_D)
                pl.BlockSpec((L, D), const),               # kron(1_M, Wv@Wm)
                pl.BlockSpec((1, D), const),               # bv@Wm + bm
                pl.BlockSpec((D, L), const),               # kron(1_M^T, I_D)
            ],
            out_specs=pl.BlockSpec((tb, L), lambda b: (b, 0)),
        ),
        compiler_params=pltpu.CompilerParams(
            dimension_semantics=("parallel",)),            # independent tiles
    )(i_flat, u_em, wa_rep, ba_rep, ws, rm, gvm, bvm, rd)

    return out_flat[:B].reshape(B, M, D)


def _reference(embeddings, params):
    """Pure-JAX reference (un-folded, includes bh) for correctness checking."""
    u_em = embeddings[:, 0:1, :]
    i_em = embeddings[:, 1:, :]
    hid = _leaky_relu(i_em @ params["wa"] + params["ba"])
    score = jnp.sum(hid * params["wh"], axis=-1, keepdims=True) + params["bh"]
    alphas = jax.nn.softmax(score, axis=-2)
    value = i_em @ params["wv"] + params["bv"]
    agg = jnp.sum(alphas * value, axis=-2)               # (B, D)
    agg = agg @ params["wm"] + params["bm"]              # (B, D)
    return _leaky_relu(u_em * (i_em + agg[:, None, :]))


def init_params(key, em_dim):
    ks = jax.random.split(key, 8)
    s = 0.1
    return {
        "wa": s * jax.random.normal(ks[0], (em_dim, em_dim), jnp.float32),
        "ba": s * jax.random.normal(ks[1], (1, em_dim), jnp.float32),
        "wh": s * jax.random.normal(ks[2], (1, em_dim), jnp.float32),
        "bh": s * jax.random.normal(ks[3], (1, 1), jnp.float32),
        "wv": s * jax.random.normal(ks[4], (em_dim, em_dim), jnp.float32),
        "bv": s * jax.random.normal(ks[5], (1, em_dim), jnp.float32),
        "wm": s * jax.random.normal(ks[6], (em_dim, em_dim), jnp.float32),
        "bm": s * jax.random.normal(ks[7], (1, em_dim), jnp.float32),
    }


if __name__ == "__main__":
    # Small shapes: batch=2, 1 user + 8 items, em_dim=32  ->  L = 256 lanes.
    B, N, D = 2, 9, 32
    key = jax.random.PRNGKey(0)
    k_emb, k_par = jax.random.split(key)
    embeddings = jax.random.normal(k_emb, (B, N, D), jnp.float32)
    params = init_params(k_par, D)
    ref = _reference(embeddings, params)

    # 1) exact path: f32 MXU weights + exact softmax divide (tight tolerance)
    out = jax.block_until_ready(att0_16_0_forward(
        embeddings, params, mxu_dtype=jnp.float32, approx_recip=False))
    assert out.shape == (B, N - 1, D)
    assert jnp.allclose(out, ref, atol=1e-4, rtol=1e-4), "f32 mismatch vs reference"

    # 2) default perf path: bf16 MXU weights + approx reciprocal, f32 streams
    out_fast = jax.block_until_ready(att0_16_0_forward(embeddings, params))
    assert jnp.allclose(out_fast, ref, atol=5e-2, rtol=5e-2), "bf16-MXU mismatch"

    # 3) bf16 HBM streams both directions (biggest bandwidth lever)
    out_bf = jax.block_until_ready(att0_16_0_forward(
        embeddings, params, stream_dtype=jnp.bfloat16, out_dtype=jnp.bfloat16))
    assert jnp.allclose(out_bf.astype(jnp.float32), ref,
                        atol=1.5e-1, rtol=1.5e-1), "bf16-stream mismatch"

    # 4) multi-tile grid with batch padding (B % TB != 0), exact settings
    B2 = 70
    emb2 = jax.random.normal(jax.random.PRNGKey(1), (B2, N, D), jnp.float32)
    ref2 = _reference(emb2, params)
    out2 = jax.block_until_ready(att0_16_0_forward(
        emb2, params, block_b=32, mxu_dtype=jnp.float32, approx_recip=False))
    assert out2.shape == (B2, N - 1, D)
    assert jnp.allclose(out2, ref2, atol=1e-4, rtol=1e-4), "tiled/padded mismatch"

    print("KERNEL_OK")
</pallas_src>

<mosaic_0001>
module attributes {stable_mosaic.version = 11 : i64} {
  func.func @att0_kernel(%arg0: i32, %arg1: memref<2x256xf32, #tpu.memory_space<vmem>>, %arg2: memref<2x32xf32, #tpu.memory_space<vmem>>, %arg3: memref<256x256xf32, #tpu.memory_space<vmem>>, %arg4: memref<1x256xf32, #tpu.memory_space<vmem>>, %arg5: memref<256x8xf32, #tpu.memory_space<vmem>>, %arg6: memref<8x256xf32, #tpu.memory_space<vmem>>, %arg7: memref<256x32xf32, #tpu.memory_space<vmem>>, %arg8: memref<1x32xf32, #tpu.memory_space<vmem>>, %arg9: memref<32x256xf32, #tpu.memory_space<vmem>>, %arg10: memref<2x256xf32, #tpu.memory_space<vmem>>) attributes {dimension_semantics = [#tpu.dimension_semantics<parallel>], iteration_bounds = array<i64: 1>, scalar_prefetch = 0 : i64, scratch_operands = 0 : i64, tpu.core_type = #tpu.core_type<tc>, window_params = [{transform_indices = @transform_0, window_bounds = array<i64: 2, 256>}, {transform_indices = @transform_1, window_bounds = array<i64: 2, 32>}, {pipeline_mode = #tpu.pipeline_mode<synchronous>, transform_indices = @transform_2, window_bounds = array<i64: 256, 256>}, {pipeline_mode = #tpu.pipeline_mode<synchronous>, transform_indices = @transform_3, window_bounds = array<i64: 1, 256>}, {pipeline_mode = #tpu.pipeline_mode<synchronous>, transform_indices = @transform_4, window_bounds = array<i64: 256, 8>}, {pipeline_mode = #tpu.pipeline_mode<synchronous>, transform_indices = @transform_5, window_bounds = array<i64: 8, 256>}, {pipeline_mode = #tpu.pipeline_mode<synchronous>, transform_indices = @transform_6, window_bounds = array<i64: 256, 32>}, {pipeline_mode = #tpu.pipeline_mode<synchronous>, transform_indices = @transform_7, window_bounds = array<i64: 1, 32>}, {pipeline_mode = #tpu.pipeline_mode<synchronous>, transform_indices = @transform_8, window_bounds = array<i64: 32, 256>}, {transform_indices = @transform_9, window_bounds = array<i64: 2, 256>}]} {
    %c0 = arith.constant 0 : index
    %c0_0 = arith.constant 0 : index
    %0 = vector.load %arg1[%c0, %c0_0] : memref<2x256xf32, #tpu.memory_space<vmem>>, vector<2x256xf32>
    %c0_1 = arith.constant 0 : index
    %c0_2 = arith.constant 0 : index
    %1 = vector.load %arg3[%c0_1, %c0_2] : memref<256x256xf32, #tpu.memory_space<vmem>>, vector<256x256xf32>
    %cst = arith.constant dense<0.000000e+00> : vector<2x256xf32>
    %2 = tpu.matmul %0, %1, %cst {dimension_numbers = #tpu.dot_dimension_numbers<[1], [0], [0], [1], [0, 0, 1, 1], [], []>} : vector<2x256xf32>, vector<256x256xf32>, vector<2x256xf32> -> vector<2x256xf32>
    %c0_3 = arith.constant 0 : index
    %c0_4 = arith.constant 0 : index
    %3 = vector.load %arg4[%c0_3, %c0_4] : memref<1x256xf32, #tpu.memory_space<vmem>>, vector<1x256xf32>
    %4 = vector.broadcast %3 : vector<1x256xf32> to vector<2x256xf32>
    %5 = arith.addf %2, %4 : vector<2x256xf32>
    %cst_5 = arith.constant 0.000000e+00 : f32
    %6 = vector.broadcast %cst_5 : f32 to vector<2x256xf32>
    %7 = arith.cmpf oge, %5, %6 : vector<2x256xf32>
    %cst_6 = arith.constant 0.00999999977 : f32
    %8 = vector.broadcast %cst_6 : f32 to vector<2x256xf32>
    %9 = arith.mulf %8, %5 : vector<2x256xf32>
    %10 = arith.select %7, %5, %9 : vector<2x256xi1>, vector<2x256xf32>
    %c0_7 = arith.constant 0 : index
    %c0_8 = arith.constant 0 : index
    %11 = vector.load %arg5[%c0_7, %c0_8] : memref<256x8xf32, #tpu.memory_space<vmem>>, vector<256x8xf32>
    %cst_9 = arith.constant dense<0.000000e+00> : vector<2x8xf32>
    %12 = tpu.matmul %10, %11, %cst_9 {dimension_numbers = #tpu.dot_dimension_numbers<[1], [0], [0], [1], [0, 0, 1, 1], [], []>} : vector<2x256xf32>, vector<256x8xf32>, vector<2x8xf32> -> vector<2x8xf32>
    %cst_10 = arith.constant dense<0xFF800000> : vector<2xf32>
    %13 = vector.multi_reduction <maximumf>, %12, %cst_10 [1] : vector<2x8xf32> to vector<2xf32>
    %14 = vector.shape_cast %13 : vector<2xf32> to vector<2x1xf32>
    %15 = vector.broadcast %14 : vector<2x1xf32> to vector<2x8xf32>
    %16 = arith.subf %12, %15 : vector<2x8xf32>
    %17 = math.exp %16 : vector<2x8xf32>
    %cst_11 = arith.constant dense<0.000000e+00> : vector<2xf32>
    %18 = vector.multi_reduction <add>, %17, %cst_11 [1] : vector<2x8xf32> to vector<2xf32>
    %19 = vector.shape_cast %18 : vector<2xf32> to vector<2x1xf32>
    %20 = vector.broadcast %19 : vector<2x1xf32> to vector<2x8xf32>
    %21 = arith.divf %17, %20 : vector<2x8xf32>
    %c0_12 = arith.constant 0 : index
    %c0_13 = arith.constant 0 : index
    %22 = vector.load %arg6[%c0_12, %c0_13] : memref<8x256xf32, #tpu.memory_space<vmem>>, vector<8x256xf32>
    %cst_14 = arith.constant dense<0.000000e+00> : vector<2x256xf32>
    %23 = tpu.matmul %21, %22, %cst_14 {dimension_numbers = #tpu.dot_dimension_numbers<[1], [0], [0], [1], [0, 0, 1, 1], [], []>} : vector<2x8xf32>, vector<8x256xf32>, vector<2x256xf32> -> vector<2x256xf32>
    %24 = arith.mulf %23, %0 : vector<2x256xf32>
    %c0_15 = arith.constant 0 : index
    %c0_16 = arith.constant 0 : index
    %25 = vector.load %arg7[%c0_15, %c0_16] : memref<256x32xf32, #tpu.memory_space<vmem>>, vector<256x32xf32>
    %cst_17 = arith.constant dense<0.000000e+00> : vector<2x32xf32>
    %26 = tpu.matmul %24, %25, %cst_17 {dimension_numbers = #tpu.dot_dimension_numbers<[1], [0], [0], [1], [0, 0, 1, 1], [], []>} : vector<2x256xf32>, vector<256x32xf32>, vector<2x32xf32> -> vector<2x32xf32>
    %c0_18 = arith.constant 0 : index
    %c0_19 = arith.constant 0 : index
    %27 = vector.load %arg8[%c0_18, %c0_19] : memref<1x32xf32, #tpu.memory_space<vmem>>, vector<1x32xf32>
    %28 = vector.broadcast %27 : vector<1x32xf32> to vector<2x32xf32>
    %29 = arith.addf %26, %28 : vector<2x32xf32>
    %c0_20 = arith.constant 0 : index
    %c0_21 = arith.constant 0 : index
    %30 = vector.load %arg2[%c0_20, %c0_21] : memref<2x32xf32, #tpu.memory_space<vmem>>, vector<2x32xf32>
    %c0_22 = arith.constant 0 : index
    %c0_23 = arith.constant 0 : index
    %31 = vector.load %arg9[%c0_22, %c0_23] : memref<32x256xf32, #tpu.memory_space<vmem>>, vector<32x256xf32>
    %cst_24 = arith.constant dense<0.000000e+00> : vector<2x256xf32>
    %32 = tpu.matmul %30, %31, %cst_24 {dimension_numbers = #tpu.dot_dimension_numbers<[1], [0], [0], [1], [0, 0, 1, 1], [], []>} : vector<2x32xf32>, vector<32x256xf32>, vector<2x256xf32> -> vector<2x256xf32>
    %33 = arith.mulf %30, %29 : vector<2x32xf32>
    %c0_25 = arith.constant 0 : index
    %c0_26 = arith.constant 0 : index
    %34 = vector.load %arg9[%c0_25, %c0_26] : memref<32x256xf32, #tpu.memory_space<vmem>>, vector<32x256xf32>
    %cst_27 = arith.constant dense<0.000000e+00> : vector<2x256xf32>
    %35 = tpu.matmul %33, %34, %cst_27 {dimension_numbers = #tpu.dot_dimension_numbers<[1], [0], [0], [1], [0, 0, 1, 1], [], []>} : vector<2x32xf32>, vector<32x256xf32>, vector<2x256xf32> -> vector<2x256xf32>
    %36 = arith.mulf %32, %0 : vector<2x256xf32>
    %37 = arith.addf %36, %35 : vector<2x256xf32>
    %cst_28 = arith.constant 0.000000e+00 : f32
    %38 = vector.broadcast %cst_28 : f32 to vector<2x256xf32>
    %39 = arith.cmpf oge, %37, %38 : vector<2x256xf32>
    %cst_29 = arith.constant 0.00999999977 : f32
    %40 = vector.broadcast %cst_29 : f32 to vector<2x256xf32>
    %41 = arith.mulf %40, %37 : vector<2x256xf32>
    %42 = arith.select %39, %37, %41 : vector<2x256xi1>, vector<2x256xf32>
    %c0_30 = arith.constant 0 : index
    %c0_31 = arith.constant 0 : index
    %43 = vector.load %arg10[%c0_30, %c0_31] : memref<2x256xf32, #tpu.memory_space<vmem>>, vector<2x256xf32>
    tpu.vector_store %arg10[%c0_30, %c0_31], %42 {strides = array<i32>} : memref<2x256xf32, #tpu.memory_space<vmem>>, vector<2x256xf32>,
    return
  }
  func.func @transform_0(%arg0: i32) -> (i32, i32) {
    %c0_i32 = arith.constant 0 : i32
    %c0_i32_0 = arith.constant 0 : i32
    return %arg0, %c0_i32 : i32, i32
  }
  func.func @transform_1(%arg0: i32) -> (i32, i32) {
    %c0_i32 = arith.constant 0 : i32
    %c0_i32_0 = arith.constant 0 : i32
    return %arg0, %c0_i32 : i32, i32
  }
  func.func @transform_2(%arg0: i32) -> (i32, i32) {
    %c0_i32 = arith.constant 0 : i32
    %c0_i32_0 = arith.constant 0 : i32
    %c0_i32_1 = arith.constant 0 : i32
    return %c0_i32, %c0_i32_0 : i32, i32
  }
  func.func @transform_3(%arg0: i32) -> (i32, i32) {
    %c0_i32 = arith.constant 0 : i32
    %c0_i32_0 = arith.constant 0 : i32
    %c0_i32_1 = arith.constant 0 : i32
    return %c0_i32, %c0_i32_0 : i32, i32
  }
  func.func @transform_4(%arg0: i32) -> (i32, i32) {
    %c0_i32 = arith.constant 0 : i32
    %c0_i32_0 = arith.constant 0 : i32
    %c0_i32_1 = arith.constant 0 : i32
    return %c0_i32, %c0_i32_0 : i32, i32
  }
  func.func @transform_5(%arg0: i32) -> (i32, i32) {
    %c0_i32 = arith.constant 0 : i32
    %c0_i32_0 = arith.constant 0 : i32
    %c0_i32_1 = arith.constant 0 : i32
    return %c0_i32, %c0_i32_0 : i32, i32
  }
  func.func @transform_6(%arg0: i32) -> (i32, i32) {
    %c0_i32 = arith.constant 0 : i32
    %c0_i32_0 = arith.constant 0 : i32
    %c0_i32_1 = arith.constant 0 : i32
    return %c0_i32, %c0_i32_0 : i32, i32
  }
  func.func @transform_7(%arg0: i32) -> (i32, i32) {
    %c0_i32 = arith.constant 0 : i32
    %c0_i32_0 = arith.constant 0 : i32
    %c0_i32_1 = arith.constant 0 : i32
    return %c0_i32, %c0_i32_0 : i32, i32
  }
  func.func @transform_8(%arg0: i32) -> (i32, i32) {
    %c0_i32 = arith.constant 0 : i32
    %c0_i32_0 = arith.constant 0 : i32
    %c0_i32_1 = arith.constant 0 : i32
    return %c0_i32, %c0_i32_0 : i32, i32
  }
  func.func @transform_9(%arg0: i32) -> (i32, i32) {
    %c0_i32 = arith.constant 0 : i32
    %c0_i32_0 = arith.constant 0 : i32
    return %arg0, %c0_i32 : i32, i32
  }
}

</mosaic_0001>

<llo_original>
// kernel: tpu_custom_call.1
$region0: #{tpu_custom_call.1}
  #allocation0 [shape = 'u32[]', space=smem, size = 0x4, offset = 0x4, fixed_abs, tag = 'smem constant byte address 0x4 - core index']
  #allocation1 [shape = 'u32[144,128]{1,0:T(1,128)}', space=vmem, size = 0x12000, scoped, tag = 'internal scratch']
  %s0 = inlined_call_operand.vmem [shape: f32[2,256], index: 0, kind: input, shape index: {}]
  %s1 = inlined_call_operand.vmem [shape: f32[2,32], index: 1, kind: input, shape index: {}]
  %s2 = inlined_call_operand.vmem [shape: f32[256,256], index: 2, kind: input, shape index: {}]
  %s3 = inlined_call_operand.hbm [shape: f32[1,256], index: 3, kind: input, shape index: {}]
  %s4 = inlined_call_operand.vmem [shape: f32[256,8], index: 4, kind: input, shape index: {}]
  %s5 = inlined_call_operand.vmem [shape: f32[8,256], index: 5, kind: input, shape index: {}]
  %s6 = inlined_call_operand.vmem [shape: f32[256,32], index: 6, kind: input, shape index: {}]
  %s7 = inlined_call_operand.vmem [shape: f32[1,32], index: 7, kind: input, shape index: {}]
  %s8 = inlined_call_operand.hbm [shape: f32[32,256], index: 8, kind: input, shape index: {}]
  %s9 = inlined_call_operand.hbm [shape: f32[2,256], index: 9, kind: output, shape index: {}]
  %s10 = sld [smem:[#allocation0]]
  $region54: #{tpu_custom_call.1} parent=0
    _
  %s12 = ssub.s32 1, %s10
  %s13 = scalar_select 0, %s12, %s10
  $region1: #{tpu_custom_call.1} parent=0
    #allocation2 [shape = 'u8[1024]{0}', space=vmem, size = 0x400, scoped, tag = 'input window, operand 3, single buffered']
    #allocation3 [shape = 's32[1]{0}', space=sflag, size = 0x4, scoped, tag = 'scoped memory for tpu_custom_call.1']
    #allocation4 [shape = 's32[1]{0}', space=sflag, size = 0x4, scoped, tag = 'scoped memory for tpu_custom_call.1']
    #allocation5 [shape = 'u8[32768]{0}', space=vmem, size = 0x8000, scoped, tag = 'input window, operand 8, single buffered']
    #allocation6 [shape = 's32[1]{0}', space=sflag, size = 0x4, scoped, tag = 'scoped memory for tpu_custom_call.1']
    #allocation7 [shape = 'u8[2048]{0}', space=vmem, size = 0x800, scoped, tag = 'output window, operand 0, single buffered']
    %14 = vsyncpa [#allocation3], 0
    %15 = vsyncpa [#allocation6], 0
    %16 = vsyncpa [#allocation4], 0
    // Predicated region
    $region2: #{tpu_custom_call.1} parent=1 // pred_check
      _
    $region3: #{tpu_custom_call.1} parent=1 // pred_check_branch
      %18 = sbr.rel (0) target = $region5
    $region4: #{tpu_custom_call.1} parent=1 // pred_region
      _
    $region5: #{tpu_custom_call.1} parent=1 // pred_fallthru
      _
    // Predicated region
    $region6: #{tpu_custom_call.1} parent=1 // pred_check
      _
    $region7: #{tpu_custom_call.1} parent=1 // pred_check_branch
      %20 = sbr.rel (0) target = $region9
    $region8: #{tpu_custom_call.1} parent=1 // pred_region
      _
    $region9: #{tpu_custom_call.1} parent=1 // pred_fallthru
      _
    // Predicated region
    $region10: #{tpu_custom_call.1} parent=1 // pred_check
      _
    $region11: #{tpu_custom_call.1} parent=1 // pred_check_branch
      %22 = sbr.rel (0) target = $region13
    $region12: #{tpu_custom_call.1} parent=1 // pred_region
      _
    $region13: #{tpu_custom_call.1} parent=1 // pred_fallthru
      _
    // Predicated region
    $region14: #{tpu_custom_call.1} parent=1 // pred_check
      _
    $region15: #{tpu_custom_call.1} parent=1 // pred_check_branch
      %24 = sbr.rel (0) target = $region17
    $region16: #{tpu_custom_call.1} parent=1 // pred_region
      %s26 = ssub.s32 32, 32
      %27 = vsyncadd [#allocation3], %s26
      %s29 = sshll.u32 [#allocation2], 4
      %s30 = int_to_ptr.vmem [resolvable:$true] %s29
      %32 = dma.hbm_to_vmem [thread:$0]  %s3, 32, %s30, [#allocation3]
    $region17: #{tpu_custom_call.1} parent=1 // pred_fallthru
      _
    // Predicated region
    $region18: #{tpu_custom_call.1} parent=1 // pred_check
      _
    $region19: #{tpu_custom_call.1} parent=1 // pred_check_branch
      %34 = sbr.rel (0) target = $region21
    $region20: #{tpu_custom_call.1} parent=1 // pred_region
      _
    $region21: #{tpu_custom_call.1} parent=1 // pred_fallthru
      _
    // Predicated region
    $region22: #{tpu_custom_call.1} parent=1 // pred_check
      _
    $region23: #{tpu_custom_call.1} parent=1 // pred_check_branch
      %36 = sbr.rel (0) target = $region25
    $region24: #{tpu_custom_call.1} parent=1 // pred_region
      _
    $region25: #{tpu_custom_call.1} parent=1 // pred_fallthru
      _
    // Predicated region
    $region26: #{tpu_custom_call.1} parent=1 // pred_check
      _
    $region27: #{tpu_custom_call.1} parent=1 // pred_check_branch
      %38 = sbr.rel (0) target = $region29
    $region28: #{tpu_custom_call.1} parent=1 // pred_region
      _
    $region29: #{tpu_custom_call.1} parent=1 // pred_fallthru
      _
    // Predicated region
    $region30: #{tpu_custom_call.1} parent=1 // pred_check
      _
    $region31: #{tpu_custom_call.1} parent=1 // pred_check_branch
      %40 = sbr.rel (0) target = $region33
    $region32: #{tpu_custom_call.1} parent=1 // pred_region
      _
    $region33: #{tpu_custom_call.1} parent=1 // pred_fallthru
      _
    // Predicated region
    $region34: #{tpu_custom_call.1} parent=1 // pred_check
      _
    $region35: #{tpu_custom_call.1} parent=1 // pred_check_branch
      %42 = sbr.rel (0) target = $region37
    $region36: #{tpu_custom_call.1} parent=1 // pred_region
      %s44 = ssub.s32 1024, 1024
      %45 = vsyncadd [#allocation6], %s44
      %s46 = sshll.u32 [#allocation5], 4
      %s47 = int_to_ptr.vmem [resolvable:$true] %s46
      %52 = dma.hbm_to_vmem [thread:$0]  %s8, 1024, %s47, [#allocation6], 256, 256, 16
    $region37: #{tpu_custom_call.1} parent=1 // pred_fallthru
      _
    // Predicated region
    $region38: #{tpu_custom_call.1} parent=1 // pred_check
      _
    $region39: #{tpu_custom_call.1} parent=1 // pred_check_branch
      %54 = sbr.rel (0) target = $region41
    $region40: #{tpu_custom_call.1} parent=1 // pred_region
      %55 = dma.done [#allocation3], 32
    $region41: #{tpu_custom_call.1} parent=1 // pred_fallthru
      _
    // Predicated region
    $region42: #{tpu_custom_call.1} parent=1 // pred_check
      _
    $region43: #{tpu_custom_call.1} parent=1 // pred_check_branch
      %57 = sbr.rel (0) target = $region45
    $region44: #{tpu_custom_call.1} parent=1 // pred_region
      %58 = dma.done [#allocation6], 1024
    $region45: #{tpu_custom_call.1} parent=1 // pred_fallthru
      _
    %v59 = vld [vmem:[%s0] sm:$0xf]
    %v60 = vld [vmem:[%s2] sm:$0xff]
    %v61 = vld [vmem:[%s2 + $0x8] sm:$0xff]
    %v62 = vld [vmem:[%s2 + $0x10] sm:$0xff]
    %v63 = vld [vmem:[%s2 + $0x18] sm:$0xff]
    %v64 = vld [vmem:[%s2 + $0x20] sm:$0xff]
    %v65 = vld [vmem:[%s2 + $0x28] sm:$0xff]
    %v66 = vld [vmem:[%s2 + $0x30] sm:$0xff]
    %v67 = vld [vmem:[%s2 + $0x38] sm:$0xff]
    %v68 = vld [vmem:[%s2 + $0x40] sm:$0xff]
    %v69 = vld [vmem:[%s2 + $0x48] sm:$0xff]
    %v70 = vld [vmem:[%s2 + $0x50] sm:$0xff]
    %v71 = vld [vmem:[%s2 + $0x58] sm:$0xff]
    %v72 = vld [vmem:[%s2 + $0x60] sm:$0xff]
    %v73 = vld [vmem:[%s2 + $0x68] sm:$0xff]
    %v74 = vld [vmem:[%s2 + $0x70] sm:$0xff]
    %v75 = vld [vmem:[%s2 + $0x78] sm:$0xff]
    %v76 = vld [vmem:[%s2 + $0x80] sm:$0xff]
    %v77 = vld [vmem:[%s2 + $0x88] sm:$0xff]
    %v78 = vld [vmem:[%s2 + $0x90] sm:$0xff]
    %v79 = vld [vmem:[%s2 + $0x98] sm:$0xff]
    %v80 = vld [vmem:[%s2 + $0xa0] sm:$0xff]
    %v81 = vld [vmem:[%s2 + $0xa8] sm:$0xff]
    %v82 = vld [vmem:[%s2 + $0xb0] sm:$0xff]
    %v83 = vld [vmem:[%s2 + $0xb8] sm:$0xff]
    %v84 = vld [vmem:[%s2 + $0xc0] sm:$0xff]
    %v85 = vld [vmem:[%s2 + $0xc8] sm:$0xff]
    %v86 = vld [vmem:[%s2 + $0xd0] sm:$0xff]
    %v87 = vld [vmem:[%s2 + $0xd8] sm:$0xff]
    %v88 = vld [vmem:[%s2 + $0xe0] sm:$0xff]
    %v89 = vld [vmem:[%s2 + $0xe8] sm:$0xff]
    %v90 = vld [vmem:[%s2 + $0xf0] sm:$0xff]
    %v91 = vld [vmem:[%s2 + $0xf8] sm:$0xff]
    %v92 = vld [vmem:[%s2 + $0x100] sm:$0xff]
    %v93 = vld [vmem:[%s2 + $0x108] sm:$0xff]
    %v94 = vld [vmem:[%s2 + $0x110] sm:$0xff]
    %v95 = vld [vmem:[%s2 + $0x118] sm:$0xff]
    %v96 = vld [vmem:[%s2 + $0x120] sm:$0xff]
    %v97 = vld [vmem:[%s2 + $0x128] sm:$0xff]
    %v98 = vld [vmem:[%s2 + $0x130] sm:$0xff]
    %v99 = vld [vmem:[%s2 + $0x138] sm:$0xff]
    %v100 = vld [vmem:[%s2 + $0x140] sm:$0xff]
    %v101 = vld [vmem:[%s2 + $0x148] sm:$0xff]
    %v102 = vld [vmem:[%s2 + $0x150] sm:$0xff]
    %v103 = vld [vmem:[%s2 + $0x158] sm:$0xff]
    %v104 = vld [vmem:[%s2 + $0x160] sm:$0xff]
    %v105 = vld [vmem:[%s2 + $0x168] sm:$0xff]
    %v106 = vld [vmem:[%s2 + $0x170] sm:$0xff]
    %v107 = vld [vmem:[%s2 + $0x178] sm:$0xff]
    %v108 = vld [vmem:[%s2 + $0x180] sm:$0xff]
    %v109 = vld [vmem:[%s2 + $0x188] sm:$0xff]
    %v110 = vld [vmem:[%s2 + $0x190] sm:$0xff]
    %v111 = vld [vmem:[%s2 + $0x198] sm:$0xff]
    %v112 = vld [vmem:[%s2 + $0x1a0] sm:$0xff]
    %v113 = vld [vmem:[%s2 + $0x1a8] sm:$0xff]
    %v114 = vld [vmem:[%s2 + $0x1b0] sm:$0xff]
    %v115 = vld [vmem:[%s2 + $0x1b8] sm:$0xff]
    %v116 = vld [vmem:[%s2 + $0x1c0] sm:$0xff]
    %v117 = vld [vmem:[%s2 + $0x1c8] sm:$0xff]
    %v118 = vld [vmem:[%s2 + $0x1d0] sm:$0xff]
    %v119 = vld [vmem:[%s2 + $0x1d8] sm:$0xff]
    %v120 = vld [vmem:[%s2 + $0x1e0] sm:$0xff]
    %v121 = vld [vmem:[%s2 + $0x1e8] sm:$0xff]
    %v122 = vld [vmem:[%s2 + $0x1f0] sm:$0xff]
    %v123 = vld [vmem:[%s2 + $0x1f8] sm:$0xff]
    %v124 = vld [vmem:[#allocation2] sm:$0x3]
    %v126 = vlaneseq
    %v127 = vshrl.u32 %v126, 7
    %v128 = vsub.s32 0, %v127
    %v129 = vrot.slane %v124, %v128
    %v130 = vlaneseq
    %v131 = vshrl.u32 %v130, 7
    %v132 = vsub.s32 1, %v131
    %v133 = vrot.slane %v124, %v132
    %v138 = vunpack.c.l.s4 1983009808
    %v139 = vunpack.c.0.s8 %v138
    %v140 = vlaneseq
    %v141 = vshrl.u32 %v140, 7
    %v142 = vsub.s32 %v139, %v141
    %v143 = vrot.slane %v59, %v142
    %v144 = vcombine.high %v143, %v143
    %147 = vmatprep.subr.mxu0 %v91
    %148 = vmatpush1.msra.mxu0 %v90
    %149 = vmatprep.subr.mxu0 %v89
    %150 = vmatpush1.msra.mxu0 %v88
    %151 = vmatprep.subr.mxu0 %v87
    %152 = vmatpush1.msra.mxu0 %v86
    %153 = vmatprep.subr.mxu0 %v85
    %154 = vmatpush1.msra.mxu0 %v84
    %155 = vmatprep.subr.mxu0 %v83
    %156 = vmatpush1.msra.mxu0 %v82
    %157 = vmatprep.subr.mxu0 %v81
    %158 = vmatpush1.msra.mxu0 %v80
    %159 = vmatprep.subr.mxu0 %v79
    %160 = vmatpush1.msra.mxu0 %v78
    %161 = vmatprep.subr.mxu0 %v77
    %162 = vmatpush1.msra.mxu0 %v76
    %163 = vmatprep.subr.mxu0 %v75
    %164 = vmatpush1.msra.mxu0 %v74
    %165 = vmatprep.subr.mxu0 %v73
    %166 = vmatpush1.msra.mxu0 %v72
    %167 = vmatprep.subr.mxu0 %v71
    %168 = vmatpush1.msra.mxu0 %v70
    %169 = vmatprep.subr.mxu0 %v69
    %170 = vmatpush1.msra.mxu0 %v68
    %171 = vmatprep.subr.mxu0 %v67
    %172 = vmatpush1.msra.mxu0 %v66
    %173 = vmatprep.subr.mxu0 %v65
    %174 = vmatpush1.msra.mxu0 %v64
    %175 = vmatprep.subr.mxu0 %v63
    %176 = vmatpush1.msra.mxu0 %v62
    %177 = vmatprep.subr.mxu0 %v61
    %178 = vmatpush1.msra.mxu0 %v60
    %179 = vmatprep.subr.mxu0 %v123
    %180 = vmatpush2.msra.mxu0 %v122
    %181 = vmatprep.subr.mxu0 %v121
    %182 = vmatpush2.msra.mxu0 %v120
    %183 = vmatprep.subr.mxu0 %v119
    %184 = vmatpush2.msra.mxu0 %v118
    %185 = vmatprep.subr.mxu0 %v117
    %186 = vmatpush2.msra.mxu0 %v116
    %187 = vmatprep.subr.mxu0 %v115
    %188 = vmatpush2.msra.mxu0 %v114
    %189 = vmatprep.subr.mxu0 %v113
    %190 = vmatpush2.msra.mxu0 %v112
    %191 = vmatprep.subr.mxu0 %v111
    %192 = vmatpush2.msra.mxu0 %v110
    %193 = vmatprep.subr.mxu0 %v109
    %194 = vmatpush2.msra.mxu0 %v108
    %195 = vmatprep.subr.mxu0 %v107
    %196 = vmatpush2.msra.mxu0 %v106
    %197 = vmatprep.subr.mxu0 %v105
    %198 = vmatpush2.msra.mxu0 %v104
    %199 = vmatprep.subr.mxu0 %v103
    %200 = vmatpush2.msra.mxu0 %v102
    %201 = vmatprep.subr.mxu0 %v101
    %202 = vmatpush2.msra.mxu0 %v100
    %203 = vmatprep.subr.mxu0 %v99
    %204 = vmatpush2.msra.mxu0 %v98
    %205 = vmatprep.subr.mxu0 %v97
    %206 = vmatpush2.msra.mxu0 %v96
    %207 = vmatprep.subr.mxu0 %v95
    %208 = vmatpush2.msra.mxu0 %v94
    %209 = vmatprep.subr.mxu0 %v93
    %210 = vmatpush2.msra.mxu0 %v92
    %211 = vmatprep.mubr.f32.mxu0 %v144
    %212 = vmatmul.mubr.f32.gmra.mxu0 %v143
    %v213 = vpop.f32.mrf.mxu0
    %v214 = vadd.f32 %v129, %v213
    %v215 = vpop.f32.mrf.mxu0
    %v216 = vadd.f32 %v133, %v215
    %217 = vdwg.mxu0
    %vm218 = vcmp.ge.f32.partialorder %v214, 0.0
    %vm219 = vcmp.ge.f32.partialorder %v216, 0.0
    %v220 = vmul.f32 %v214, 0.01
    %v221 = vmul.f32 %v216, 0.01
    %v222 = vsel %vm218, %v214, %v220
    %v223 = vsel %vm219, %v216, %v221
    %v224 = vld [vmem:[%s4] sm:$0xff]
    %v225 = vld [vmem:[%s4 + $0x8] sm:$0xff]
    %v226 = vld [vmem:[%s4 + $0x10] sm:$0xff]
    %v227 = vld [vmem:[%s4 + $0x18] sm:$0xff]
    %v228 = vld [vmem:[%s4 + $0x20] sm:$0xff]
    %v229 = vld [vmem:[%s4 + $0x28] sm:$0xff]
    %v230 = vld [vmem:[%s4 + $0x30] sm:$0xff]
    %v231 = vld [vmem:[%s4 + $0x38] sm:$0xff]
    %v232 = vld [vmem:[%s4 + $0x40] sm:$0xff]
    %v233 = vld [vmem:[%s4 + $0x48] sm:$0xff]
    %v234 = vld [vmem:[%s4 + $0x50] sm:$0xff]
    %v235 = vld [vmem:[%s4 + $0x58] sm:$0xff]
    %v236 = vld [vmem:[%s4 + $0x60] sm:$0xff]
    %v237 = vld [vmem:[%s4 + $0x68] sm:$0xff]
    %v238 = vld [vmem:[%s4 + $0x70] sm:$0xff]
    %v239 = vld [vmem:[%s4 + $0x78] sm:$0xff]
    %v240 = vld [vmem:[%s4 + $0x80] sm:$0xff]
    %v241 = vld [vmem:[%s4 + $0x88] sm:$0xff]
    %v242 = vld [vmem:[%s4 + $0x90] sm:$0xff]
    %v243 = vld [vmem:[%s4 + $0x98] sm:$0xff]
    %v244 = vld [vmem:[%s4 + $0xa0] sm:$0xff]
    %v245 = vld [vmem:[%s4 + $0xa8] sm:$0xff]
    %v246 = vld [vmem:[%s4 + $0xb0] sm:$0xff]
    %v247 = vld [vmem:[%s4 + $0xb8] sm:$0xff]
    %v248 = vld [vmem:[%s4 + $0xc0] sm:$0xff]
    %v249 = vld [vmem:[%s4 + $0xc8] sm:$0xff]
    %v250 = vld [vmem:[%s4 + $0xd0] sm:$0xff]
    %v251 = vld [vmem:[%s4 + $0xd8] sm:$0xff]
    %v252 = vld [vmem:[%s4 + $0xe0] sm:$0xff]
    %v253 = vld [vmem:[%s4 + $0xe8] sm:$0xff]
    %v254 = vld [vmem:[%s4 + $0xf0] sm:$0xff]
    %v255 = vld [vmem:[%s4 + $0xf8] sm:$0xff]
    %256 = vmatprep.subr.mxu0 0.0
    %257 = vmatpush1.msra.mxu0 %v239
    %258 = vmatprep.subr.mxu0 0.0
    %259 = vmatpush1.msra.mxu0 %v238
    %260 = vmatprep.subr.mxu0 0.0
    %261 = vmatpush1.msra.mxu0 %v237
    %262 = vmatprep.subr.mxu0 0.0
    %263 = vmatpush1.msra.mxu0 %v236
    %264 = vmatprep.subr.mxu0 0.0
    %265 = vmatpush1.msra.mxu0 %v235
    %266 = vmatprep.subr.mxu0 0.0
    %267 = vmatpush1.msra.mxu0 %v234
    %268 = vmatprep.subr.mxu0 0.0
    %269 = vmatpush1.msra.mxu0 %v233
    %270 = vmatprep.subr.mxu0 0.0
    %271 = vmatpush1.msra.mxu0 %v232
    %272 = vmatprep.subr.mxu0 0.0
    %273 = vmatpush1.msra.mxu0 %v231
    %274 = vmatprep.subr.mxu0 0.0
    %275 = vmatpush1.msra.mxu0 %v230
    %276 = vmatprep.subr.mxu0 0.0
    %277 = vmatpush1.msra.mxu0 %v229
    %278 = vmatprep.subr.mxu0 0.0
    %279 = vmatpush1.msra.mxu0 %v228
    %280 = vmatprep.subr.mxu0 0.0
    %281 = vmatpush1.msra.mxu0 %v227
    %282 = vmatprep.subr.mxu0 0.0
    %283 = vmatpush1.msra.mxu0 %v226
    %284 = vmatprep.subr.mxu0 0.0
    %285 = vmatpush1.msra.mxu0 %v225
    %286 = vmatprep.subr.mxu0 0.0
    %287 = vmatpush1.msra.mxu0 %v224
    %288 = vmatprep.subr.mxu0 0.0
    %289 = vmatpush2.msra.mxu0 %v255
    %290 = vmatprep.subr.mxu0 0.0
    %291 = vmatpush2.msra.mxu0 %v254
    %292 = vmatprep.subr.mxu0 0.0
    %293 = vmatpush2.msra.mxu0 %v253
    %294 = vmatprep.subr.mxu0 0.0
    %295 = vmatpush2.msra.mxu0 %v252
    %296 = vmatprep.subr.mxu0 0.0
    %297 = vmatpush2.msra.mxu0 %v251
    %298 = vmatprep.subr.mxu0 0.0
    %299 = vmatpush2.msra.mxu0 %v250
    %300 = vmatprep.subr.mxu0 0.0
    %301 = vmatpush2.msra.mxu0 %v249
    %302 = vmatprep.subr.mxu0 0.0
    %303 = vmatpush2.msra.mxu0 %v248
    %304 = vmatprep.subr.mxu0 0.0
    %305 = vmatpush2.msra.mxu0 %v247
    %306 = vmatprep.subr.mxu0 0.0
    %307 = vmatpush2.msra.mxu0 %v246
    %308 = vmatprep.subr.mxu0 0.0
    %309 = vmatpush2.msra.mxu0 %v245
    %310 = vmatprep.subr.mxu0 0.0
    %311 = vmatpush2.msra.mxu0 %v244
    %312 = vmatprep.subr.mxu0 0.0
    %313 = vmatpush2.msra.mxu0 %v243
    %314 = vmatprep.subr.mxu0 0.0
    %315 = vmatpush2.msra.mxu0 %v242
    %316 = vmatprep.subr.mxu0 0.0
    %317 = vmatpush2.msra.mxu0 %v241
    %318 = vmatprep.subr.mxu0 0.0
    %319 = vmatpush2.msra.mxu0 %v240
    %320 = vmatprep.mubr.f32.mxu0 %v223
    %321 = vmatmul.mubr.f32.gmra.mxu0 %v222
    %v322 = vpop.f32.mrf.mxu0
    %v323 = vadd.f32 0.0, %v322
    %v324 = vpop.f32.mrf.mxu0
    %325 = vdwg.mxu0
    %vm326 = vcmask 58368
    %v327 = vsel %vm326, %v323, -inf
    %328 = vmax.xlane.f32.xlu0 %v327
    %v329 = vpop.xlane.xlu0 %328
    %v330 = vsub.f32 %v323, %v329
    %v331 = vmul.f32 %v330, 1.442695
    %v332 = vpow.pop %v331
    %v333 = vsel %vm326, %v332, 0.0
    %334 = vadd.xlane.f32.xlu0 %v333
    %v335 = vpop.xlane.xlu0 %334
    %v336 = vrcp.pop %v335
    %v337 = vmul.f32 %v332, %v336
    %v338 = vld [vmem:[%s5] sm:$0xff]
    %v339 = vld [vmem:[%s5 + $0x8] sm:$0xff]
    %vm340 = vcmask 64512
    %v342 = vsel %vm340, %v337, 0
    %344 = vmatprep.subr.mxu0 0.0
    %345 = vmatpush1.msra.mxu0 0.0
    %346 = vmatprep.subr.mxu0 0.0
    %347 = vmatpush1.msra.mxu0 0.0
    %348 = vmatprep.subr.mxu0 0.0
    %349 = vmatpush1.msra.mxu0 0.0
    %350 = vmatprep.subr.mxu0 0.0
    %351 = vmatpush1.msra.mxu0 0.0
    %352 = vmatprep.subr.mxu0 0.0
    %353 = vmatpush1.msra.mxu0 0.0
    %354 = vmatprep.subr.mxu0 0.0
    %355 = vmatpush1.msra.mxu0 0.0
    %356 = vmatprep.subr.mxu0 0.0
    %357 = vmatpush1.msra.mxu0 0.0
    %358 = vmatprep.subr.mxu0 0.0
    %359 = vmatpush1.msra.mxu0 0.0
    %360 = vmatprep.subr.mxu0 0.0
    %361 = vmatpush1.msra.mxu0 0.0
    %362 = vmatprep.subr.mxu0 0.0
    %363 = vmatpush1.msra.mxu0 0.0
    %364 = vmatprep.subr.mxu0 0.0
    %365 = vmatpush1.msra.mxu0 0.0
    %366 = vmatprep.subr.mxu0 0.0
    %367 = vmatpush1.msra.mxu0 0.0
    %368 = vmatprep.subr.mxu0 0.0
    %369 = vmatpush1.msra.mxu0 0.0
    %370 = vmatprep.subr.mxu0 0.0
    %371 = vmatpush1.msra.mxu0 0.0
    %372 = vmatprep.subr.mxu0 0.0
    %373 = vmatpush1.msra.mxu0 0.0
    %374 = vmatprep.subr.mxu0 %v339
    %375 = vmatpush1.msra.mxu0 %v338
    %376 = vmatprep.subr.mxu0 0.0
    %377 = vmatpush2.msra.mxu0 0.0
    %378 = vmatprep.subr.mxu0 0.0
    %379 = vmatpush2.msra.mxu0 0.0
    %380 = vmatprep.subr.mxu0 0.0
    %381 = vmatpush2.msra.mxu0 0.0
    %382 = vmatprep.subr.mxu0 0.0
    %383 = vmatpush2.msra.mxu0 0.0
    %384 = vmatprep.subr.mxu0 0.0
    %385 = vmatpush2.msra.mxu0 0.0
    %386 = vmatprep.subr.mxu0 0.0
    %387 = vmatpush2.msra.mxu0 0.0
    %388 = vmatprep.subr.mxu0 0.0
    %389 = vmatpush2.msra.mxu0 0.0
    %390 = vmatprep.subr.mxu0 0.0
    %391 = vmatpush2.msra.mxu0 0.0
    %392 = vmatprep.subr.mxu0 0.0
    %393 = vmatpush2.msra.mxu0 0.0
    %394 = vmatprep.subr.mxu0 0.0
    %395 = vmatpush2.msra.mxu0 0.0
    %396 = vmatprep.subr.mxu0 0.0
    %397 = vmatpush2.msra.mxu0 0.0
    %398 = vmatprep.subr.mxu0 0.0
    %399 = vmatpush2.msra.mxu0 0.0
    %400 = vmatprep.subr.mxu0 0.0
    %401 = vmatpush2.msra.mxu0 0.0
    %402 = vmatprep.subr.mxu0 0.0
    %403 = vmatpush2.msra.mxu0 0.0
    %404 = vmatprep.subr.mxu0 0.0
    %405 = vmatpush2.msra.mxu0 0.0
    %406 = vmatprep.subr.mxu0 0.0
    %407 = vmatpush2.msra.mxu0 0.0
    %408 = vmatprep.mubr.f32.mxu0 0.0
    %409 = vmatmul.mubr.f32.gmra.mxu0 %v342
    %v410 = vpop.f32.mrf.mxu0
    %v411 = vadd.f32 0.0, %v410
    %v412 = vpop.f32.mrf.mxu0
    %v413 = vadd.f32 0.0, %v412
    %414 = vdwg.mxu0
    %v415 = vmul.f32 %v411, %v143
    %v416 = vmul.f32 %v413, %v144
    %v417 = vld [vmem:[%s6] sm:$0xff]
    %v418 = vld [vmem:[%s6 + $0x8] sm:$0xff]
    %v419 = vld [vmem:[%s6 + $0x10] sm:$0xff]
    %v420 = vld [vmem:[%s6 + $0x18] sm:$0xff]
    %v421 = vld [vmem:[%s6 + $0x20] sm:$0xff]
    %v422 = vld [vmem:[%s6 + $0x28] sm:$0xff]
    %v423 = vld [vmem:[%s6 + $0x30] sm:$0xff]
    %v424 = vld [vmem:[%s6 + $0x38] sm:$0xff]
    %v425 = vld [vmem:[%s6 + $0x40] sm:$0xff]
    %v426 = vld [vmem:[%s6 + $0x48] sm:$0xff]
    %v427 = vld [vmem:[%s6 + $0x50] sm:$0xff]
    %v428 = vld [vmem:[%s6 + $0x58] sm:$0xff]
    %v429 = vld [vmem:[%s6 + $0x60] sm:$0xff]
    %v430 = vld [vmem:[%s6 + $0x68] sm:$0xff]
    %v431 = vld [vmem:[%s6 + $0x70] sm:$0xff]
    %v432 = vld [vmem:[%s6 + $0x78] sm:$0xff]
    %v433 = vld [vmem:[%s6 + $0x80] sm:$0xff]
    %v434 = vld [vmem:[%s6 + $0x88] sm:$0xff]
    %v435 = vld [vmem:[%s6 + $0x90] sm:$0xff]
    %v436 = vld [vmem:[%s6 + $0x98] sm:$0xff]
    %v437 = vld [vmem:[%s6 + $0xa0] sm:$0xff]
    %v438 = vld [vmem:[%s6 + $0xa8] sm:$0xff]
    %v439 = vld [vmem:[%s6 + $0xb0] sm:$0xff]
    %v440 = vld [vmem:[%s6 + $0xb8] sm:$0xff]
    %v441 = vld [vmem:[%s6 + $0xc0] sm:$0xff]
    %v442 = vld [vmem:[%s6 + $0xc8] sm:$0xff]
    %v443 = vld [vmem:[%s6 + $0xd0] sm:$0xff]
    %v444 = vld [vmem:[%s6 + $0xd8] sm:$0xff]
    %v445 = vld [vmem:[%s6 + $0xe0] sm:$0xff]
    %v446 = vld [vmem:[%s6 + $0xe8] sm:$0xff]
    %v447 = vld [vmem:[%s6 + $0xf0] sm:$0xff]
    %v448 = vld [vmem:[%s6 + $0xf8] sm:$0xff]
    %v449 = vld [vmem:[%s7] sm:$0x1]
    %v451 = vlaneseq
    %v452 = vshrl.u32 %v451, 7
    %v453 = vsub.s32 0, %v452
    %v454 = vrot.slane %v449, %v453
    %456 = vmatprep.subr.mxu0 0.0
    %457 = vmatpush1.msra.mxu0 %v432
    %458 = vmatprep.subr.mxu0 0.0
    %459 = vmatpush1.msra.mxu0 %v431
    %460 = vmatprep.subr.mxu0 0.0
    %461 = vmatpush1.msra.mxu0 %v430
    %462 = vmatprep.subr.mxu0 0.0
    %463 = vmatpush1.msra.mxu0 %v429
    %464 = vmatprep.subr.mxu0 0.0
    %465 = vmatpush1.msra.mxu0 %v428
    %466 = vmatprep.subr.mxu0 0.0
    %467 = vmatpush1.msra.mxu0 %v427
    %468 = vmatprep.subr.mxu0 0.0
    %469 = vmatpush1.msra.mxu0 %v426
    %470 = vmatprep.subr.mxu0 0.0
    %471 = vmatpush1.msra.mxu0 %v425
    %472 = vmatprep.subr.mxu0 0.0
    %473 = vmatpush1.msra.mxu0 %v424
    %474 = vmatprep.subr.mxu0 0.0
    %475 = vmatpush1.msra.mxu0 %v423
    %476 = vmatprep.subr.mxu0 0.0
    %477 = vmatpush1.msra.mxu0 %v422
    %478 = vmatprep.subr.mxu0 0.0
    %479 = vmatpush1.msra.mxu0 %v421
    %480 = vmatprep.subr.mxu0 0.0
    %481 = vmatpush1.msra.mxu0 %v420
    %482 = vmatprep.subr.mxu0 0.0
    %483 = vmatpush1.msra.mxu0 %v419
    %484 = vmatprep.subr.mxu0 0.0
    %485 = vmatpush1.msra.mxu0 %v418
    %486 = vmatprep.subr.mxu0 0.0
    %487 = vmatpush1.msra.mxu0 %v417
    %488 = vmatprep.subr.mxu0 0.0
    %489 = vmatpush2.msra.mxu0 %v448
    %490 = vmatprep.subr.mxu0 0.0
    %491 = vmatpush2.msra.mxu0 %v447
    %492 = vmatprep.subr.mxu0 0.0
    %493 = vmatpush2.msra.mxu0 %v446
    %494 = vmatprep.subr.mxu0 0.0
    %495 = vmatpush2.msra.mxu0 %v445
    %496 = vmatprep.subr.mxu0 0.0
    %497 = vmatpush2.msra.mxu0 %v444
    %498 = vmatprep.subr.mxu0 0.0
    %499 = vmatpush2.msra.mxu0 %v443
    %500 = vmatprep.subr.mxu0 0.0
    %501 = vmatpush2.msra.mxu0 %v442
    %502 = vmatprep.subr.mxu0 0.0
    %503 = vmatpush2.msra.mxu0 %v441
    %504 = vmatprep.subr.mxu0 0.0
    %505 = vmatpush2.msra.mxu0 %v440
    %506 = vmatprep.subr.mxu0 0.0
    %507 = vmatpush2.msra.mxu0 %v439
    %508 = vmatprep.subr.mxu0 0.0
    %509 = vmatpush2.msra.mxu0 %v438
    %510 = vmatprep.subr.mxu0 0.0
    %511 = vmatpush2.msra.mxu0 %v437
    %512 = vmatprep.subr.mxu0 0.0
    %513 = vmatpush2.msra.mxu0 %v436
    %514 = vmatprep.subr.mxu0 0.0
    %515 = vmatpush2.msra.mxu0 %v435
    %516 = vmatprep.subr.mxu0 0.0
    %517 = vmatpush2.msra.mxu0 %v434
    %518 = vmatprep.subr.mxu0 0.0
    %519 = vmatpush2.msra.mxu0 %v433
    %520 = vmatprep.mubr.f32.mxu0 %v416
    %521 = vmatmul.mubr.f32.gmra.mxu0 %v415
    %v522 = vpop.f32.mrf.mxu0
    %v523 = vadd.f32 %v454, %v522
    %v524 = vpop.f32.mrf.mxu0
    %525 = vdwg.mxu0
    %v526 = vld [vmem:[%s1] sm:$0x3]
    %v527 = vld [vmem:[#allocation5] sm:$0xff]
    %v528 = vld [vmem:[#allocation5 + $0x8] sm:$0xff]
    %v529 = vld [vmem:[#allocation5 + $0x10] sm:$0xff]
    %v530 = vld [vmem:[#allocation5 + $0x18] sm:$0xff]
    %v531 = vld [vmem:[#allocation5 + $0x20] sm:$0xff]
    %v532 = vld [vmem:[#allocation5 + $0x28] sm:$0xff]
    %v533 = vld [vmem:[#allocation5 + $0x30] sm:$0xff]
    %v534 = vld [vmem:[#allocation5 + $0x38] sm:$0xff]
    %vm535 = vcmask 261120
    %v537 = vsel %vm535, %v526, 0
    %539 = vmatprep.subr.mxu0 0.0
    %540 = vmatpush1.msra.mxu0 0.0
    %541 = vmatprep.subr.mxu0 0.0
    %542 = vmatpush1.msra.mxu0 0.0
    %543 = vmatprep.subr.mxu0 0.0
    %544 = vmatpush1.msra.mxu0 0.0
    %545 = vmatprep.subr.mxu0 0.0
    %546 = vmatpush1.msra.mxu0 0.0
    %547 = vmatprep.subr.mxu0 0.0
    %548 = vmatpush1.msra.mxu0 0.0
    %549 = vmatprep.subr.mxu0 0.0
    %550 = vmatpush1.msra.mxu0 0.0
    %551 = vmatprep.subr.mxu0 0.0
    %552 = vmatpush1.msra.mxu0 0.0
    %553 = vmatprep.subr.mxu0 0.0
    %554 = vmatpush1.msra.mxu0 0.0
    %555 = vmatprep.subr.mxu0 0.0
    %556 = vmatpush1.msra.mxu0 0.0
    %557 = vmatprep.subr.mxu0 0.0
    %558 = vmatpush1.msra.mxu0 0.0
    %559 = vmatprep.subr.mxu0 0.0
    %560 = vmatpush1.msra.mxu0 0.0
    %561 = vmatprep.subr.mxu0 0.0
    %562 = vmatpush1.msra.mxu0 0.0
    %563 = vmatprep.subr.mxu0 %v534
    %564 = vmatpush1.msra.mxu0 %v533
    %565 = vmatprep.subr.mxu0 %v532
    %566 = vmatpush1.msra.mxu0 %v531
    %567 = vmatprep.subr.mxu0 %v530
    %568 = vmatpush1.msra.mxu0 %v529
    %569 = vmatprep.subr.mxu0 %v528
    %570 = vmatpush1.msra.mxu0 %v527
    %571 = vmatprep.subr.mxu0 0.0
    %572 = vmatpush2.msra.mxu0 0.0
    %573 = vmatprep.subr.mxu0 0.0
    %574 = vmatpush2.msra.mxu0 0.0
    %575 = vmatprep.subr.mxu0 0.0
    %576 = vmatpush2.msra.mxu0 0.0
    %577 = vmatprep.subr.mxu0 0.0
    %578 = vmatpush2.msra.mxu0 0.0
    %579 = vmatprep.subr.mxu0 0.0
    %580 = vmatpush2.msra.mxu0 0.0
    %581 = vmatprep.subr.mxu0 0.0
    %582 = vmatpush2.msra.mxu0 0.0
    %583 = vmatprep.subr.mxu0 0.0
    %584 = vmatpush2.msra.mxu0 0.0
    %585 = vmatprep.subr.mxu0 0.0
    %586 = vmatpush2.msra.mxu0 0.0
    %587 = vmatprep.subr.mxu0 0.0
    %588 = vmatpush2.msra.mxu0 0.0
    %589 = vmatprep.subr.mxu0 0.0
    %590 = vmatpush2.msra.mxu0 0.0
    %591 = vmatprep.subr.mxu0 0.0
    %592 = vmatpush2.msra.mxu0 0.0
    %593 = vmatprep.subr.mxu0 0.0
    %594 = vmatpush2.msra.mxu0 0.0
    %595 = vmatprep.subr.mxu0 0.0
    %596 = vmatpush2.msra.mxu0 0.0
    %597 = vmatprep.subr.mxu0 0.0
    %598 = vmatpush2.msra.mxu0 0.0
    %599 = vmatprep.subr.mxu0 0.0
    %600 = vmatpush2.msra.mxu0 0.0
    %601 = vmatprep.subr.mxu0 0.0
    %602 = vmatpush2.msra.mxu0 0.0
    %603 = vmatprep.mubr.f32.mxu0 0.0
    %604 = vmatmul.mubr.f32.gmra.mxu0 %v537
    %v605 = vpop.f32.mrf.mxu0
    %v606 = vadd.f32 0.0, %v605
    %v607 = vpop.f32.mrf.mxu0
    %v608 = vadd.f32 0.0, %v607
    %609 = vdwg.mxu0
    %v610 = vmul.f32 %v526, %v523
    %v612 = vsel %vm535, %v610, 0
    %614 = vmatprep.subr.mxu0 0.0
    %615 = vmatpush1.msra.mxu0 0.0
    %616 = vmatprep.subr.mxu0 0.0
    %617 = vmatpush1.msra.mxu0 0.0
    %618 = vmatprep.subr.mxu0 0.0
    %619 = vmatpush1.msra.mxu0 0.0
    %620 = vmatprep.subr.mxu0 0.0
    %621 = vmatpush1.msra.mxu0 0.0
    %622 = vmatprep.subr.mxu0 0.0
    %623 = vmatpush1.msra.mxu0 0.0
    %624 = vmatprep.subr.mxu0 0.0
    %625 = vmatpush1.msra.mxu0 0.0
    %626 = vmatprep.subr.mxu0 0.0
    %627 = vmatpush1.msra.mxu0 0.0
    %628 = vmatprep.subr.mxu0 0.0
    %629 = vmatpush1.msra.mxu0 0.0
    %630 = vmatprep.subr.mxu0 0.0
    %631 = vmatpush1.msra.mxu0 0.0
    %632 = vmatprep.subr.mxu0 0.0
    %633 = vmatpush1.msra.mxu0 0.0
    %634 = vmatprep.subr.mxu0 0.0
    %635 = vmatpush1.msra.mxu0 0.0
    %636 = vmatprep.subr.mxu0 0.0
    %637 = vmatpush1.msra.mxu0 0.0
    %638 = vmatprep.subr.mxu0 %v534
    %639 = vmatpush1.msra.mxu0 %v533
    %640 = vmatprep.subr.mxu0 %v532
    %641 = vmatpush1.msra.mxu0 %v531
    %642 = vmatprep.subr.mxu0 %v530
    %643 = vmatpush1.msra.mxu0 %v529
    %644 = vmatprep.subr.mxu0 %v528
    %645 = vmatpush1.msra.mxu0 %v527
    %646 = vmatprep.subr.mxu0 0.0
    %647 = vmatpush2.msra.mxu0 0.0
    %648 = vmatprep.subr.mxu0 0.0
    %649 = vmatpush2.msra.mxu0 0.0
    %650 = vmatprep.subr.mxu0 0.0
    %651 = vmatpush2.msra.mxu0 0.0
    %652 = vmatprep.subr.mxu0 0.0
    %653 = vmatpush2.msra.mxu0 0.0
    %654 = vmatprep.subr.mxu0 0.0
    %655 = vmatpush2.msra.mxu0 0.0
    %656 = vmatprep.subr.mxu0 0.0
    %657 = vmatpush2.msra.mxu0 0.0
    %658 = vmatprep.subr.mxu0 0.0
    %659 = vmatpush2.msra.mxu0 0.0
    %660 = vmatprep.subr.mxu0 0.0
    %661 = vmatpush2.msra.mxu0 0.0
    %662 = vmatprep.subr.mxu0 0.0
    %663 = vmatpush2.msra.mxu0 0.0
    %664 = vmatprep.subr.mxu0 0.0
    %665 = vmatpush2.msra.mxu0 0.0
    %666 = vmatprep.subr.mxu0 0.0
    %667 = vmatpush2.msra.mxu0 0.0
    %668 = vmatprep.subr.mxu0 0.0
    %669 = vmatpush2.msra.mxu0 0.0
    %670 = vmatprep.subr.mxu0 0.0
    %671 = vmatpush2.msra.mxu0 0.0
    %672 = vmatprep.subr.mxu0 0.0
    %673 = vmatpush2.msra.mxu0 0.0
    %674 = vmatprep.subr.mxu0 0.0
    %675 = vmatpush2.msra.mxu0 0.0
    %676 = vmatprep.subr.mxu0 0.0
    %677 = vmatpush2.msra.mxu0 0.0
    %678 = vmatprep.mubr.f32.mxu0 0.0
    %679 = vmatmul.mubr.f32.gmra.mxu0 %v612
    %v680 = vpop.f32.mrf.mxu0
    %v681 = vadd.f32 0.0, %v680
    %v682 = vpop.f32.mrf.mxu0
    %v683 = vadd.f32 0.0, %v682
    %684 = vdwg.mxu0
    %v685 = vmul.f32 %v606, %v143
    %v686 = vmul.f32 %v608, %v144
    %v687 = vadd.f32 %v685, %v681
    %v688 = vadd.f32 %v686, %v683
    %vm689 = vcmp.ge.f32.partialorder %v687, 0.0
    %vm690 = vcmp.ge.f32.partialorder %v688, 0.0
    %v691 = vmul.f32 %v687, 0.01
    %v692 = vmul.f32 %v688, 0.01
    %v693 = vsel %vm689, %v687, %v691
    %v694 = vsel %vm690, %v688, %v692
    %v697 = vcombine.low %v693, %v694
    %v699 = vunpack.c.l.s4 1983009808
    %v700 = vunpack.c.0.s8 %v699
    %v701 = vlaneseq
    %v702 = vshrl.u32 %v701, 7
    %v703 = vsub.s32 %v700, %v702
    %v704 = vrot.slane %v697, %v703
    %706 = vst [vmem:[#allocation7] sm:$0xf] %v704
    // Predicated region
    $region46: #{tpu_custom_call.1} parent=1 // pred_check
      _
    $region47: #{tpu_custom_call.1} parent=1 // pred_check_branch
      %708 = sbr.rel (0) target = $region49
    $region48: #{tpu_custom_call.1} parent=1 // pred_region
      %s710 = ssub.s32 64, 64
      %711 = vsyncadd [#allocation4], %s710
      %s713 = sshll.u32 [#allocation7], 4
      %s714 = int_to_ptr.vmem [resolvable:$true] %s713
      %716 = dma.vmem_to_hbm [thread:$0]  %s714, 64, %s9, [#allocation4]
    $region49: #{tpu_custom_call.1} parent=1 // pred_fallthru
      _
    // Predicated region
    $region50: #{tpu_custom_call.1} parent=1 // pred_check
      _
    $region51: #{tpu_custom_call.1} parent=1 // pred_check_branch
      %718 = sbr.rel (0) target = $region53
    $region52: #{tpu_custom_call.1} parent=1 // pred_region
      %719 = dma.done [#allocation4], 64
    $region53: #{tpu_custom_call.1} parent=1 // pred_fallthru
      _
    %720 = vsyncpa [#allocation3], 1
    %721 = vsyncpa [#allocation6], 1
    %722 = vsyncpa [#allocation4], 1

</llo_original>
